<compile_context>
chip_gen: v7x
topology: tpu7x:2x2x1
jax: 0.10.0
libtpu: 0.0.40
codegen_flags: <defaults>
</compile_context>

<pallas_src>
import functools

import jax
import jax.numpy as jnp
import numpy as np
from jax.experimental import pallas as pl
from jax.experimental.pallas import tpu as pltpu

_LANE = 128              # TPU lane width
_CHUNK = 256             # inner vreg-resident chunk (lanes); multiple of 128
_MAX_TILE = 2048         # max lane-tile per grid step; multiple of _CHUNK
_PALLAS_MIN_ELEMS = 1024 # below this, pure-JAX gather beats the launch cost


def _round_up(x, m):
    return (x + m - 1) // m * m


def phase_cell_kernel(idx_ref, ptab_ref, mtab_ref, out_ref, *, N, M, chunk):
    """One lane-tile of TL elements, processed in vreg-resident chunks.

    idx_ref:  (4, TL)   int32  rows = [ctx_phase, ctx_mag, self_phase, self_mag]
    ptab_ref: (2, Npad) f32    rows = [cos, dcos]  (lane-padded with zeros)
    mtab_ref: (2, Mpad) f32    rows = [exp, dexp]  (lane-padded with zeros)
    out_ref:  (8, TL)   f32    rows = [phase bits, mag bits, signal,
                                       grad_phase, grad_mag, 0, 0, 0]
    """
    TL = idx_ref.shape[1]
    Npad = ptab_ref.shape[1]
    Mpad = mtab_ref.shape[1]

    # Tables stay resident in vregs for the whole tile (tiny).
    ptab = ptab_ref[...]                                            # (2, Npad)
    mtab = mtab_ref[...]                                            # (2, Mpad)

    # Sublane iotas only; the lane dimension is broadcast in the compare.
    iota_n = jax.lax.broadcasted_iota(jnp.int32, (Npad, 1), 0)
    iota_m = jax.lax.broadcasted_iota(jnp.int32, (Mpad, 1), 0)
    pad3 = jnp.zeros((3, chunk), jnp.float32)                       # hoisted

    # Fully-unrolled inner loop over 256-lane chunks with STATIC offsets
    # (equivalent to lax.fori_loop(..., unroll=True) but guarantees static
    # slices).  Keeps the (Npad/Mpad, chunk) one-hots vreg-resident.
    for c in range(TL // chunk):
        off = c * chunk
        ctx_p = idx_ref[0:1, off:off + chunk]                       # (1, chunk)
        ctx_m = idx_ref[1:2, off:off + chunk]
        self_p = idx_ref[2:3, off:off + chunk]
        self_m = idx_ref[3:4, off:off + chunk]

        # Modulo via one conditional subtraction (valid: both addends < N / M).
        p_sum = ctx_p + self_p
        phase_out = jnp.where(p_sum >= N, p_sum - N, p_sum)         # (1, chunk)
        m_sum = ctx_m + self_m
        mag_out = jnp.where(m_sum >= M, m_sum - M, m_sum)           # (1, chunk)

        # One-hot gathers as small MXU matmuls.
        oh_p = (iota_n == phase_out).astype(jnp.float32)            # (Npad, chunk)
        oh_m = (iota_m == mag_out).astype(jnp.float32)              # (Mpad, chunk)
        cd = jnp.dot(ptab, oh_p, preferred_element_type=jnp.float32)  # [cos; dcos]
        ed = jnp.dot(mtab, oh_m, preferred_element_type=jnp.float32)  # [exp; dexp]

        cos_v, dcos_v = cd[0:1, :], cd[1:2, :]
        exp_v, dexp_v = ed[0:1, :], ed[1:2, :]

        # One unmasked 8-sublane, lane-dense store per chunk.
        out_ref[:, off:off + chunk] = jnp.concatenate(
            [pltpu.bitcast(phase_out, jnp.float32),
             pltpu.bitcast(mag_out, jnp.float32),
             cos_v * exp_v,                                          # signal
             dcos_v * exp_v,                                         # grad_phase
             cos_v * dexp_v,                                         # grad_mag
             pad3],
            axis=0)


def _phase_cell_jax(idx4, cos_t, dcos_t, exp_t, dexp_t, N, M):
    """Pure-JAX fallback for tiny problems (identical semantics)."""
    phase_out = (idx4[0] + idx4[2]) % N
    mag_out = (idx4[1] + idx4[3]) % M
    cos_v = jnp.take(cos_t, phase_out)
    exp_v = jnp.take(exp_t, mag_out)
    dcos_v = jnp.take(dcos_t, phase_out)
    dexp_v = jnp.take(dexp_t, mag_out)
    return phase_out, mag_out, cos_v * exp_v, dcos_v * exp_v, cos_v * dexp_v


def _phase_cell_core(idx4, cos_t, dcos_t, exp_t, dexp_t, use_pallas=None):
    """idx4: (4, L) int32. Returns (phase, mag, signal, grad_phase, grad_mag),
    each of shape (L,)."""
    N = cos_t.shape[0]
    M = exp_t.shape[0]
    L = idx4.shape[1]

    if use_pallas is None:
        use_pallas = L >= _PALLAS_MIN_ELEMS
    if not use_pallas:
        return _phase_cell_jax(idx4, cos_t, dcos_t, exp_t, dexp_t, N, M)

    # Lane-padded (zero-filled) lookup tables; contraction dims only need
    # 8-sublane alignment for the one-hot, not 128.
    Npad = _round_up(N, 8)
    Mpad = _round_up(M, 8)
    ptab = jnp.zeros((2, Npad), jnp.float32)
    ptab = ptab.at[0, :N].set(cos_t.astype(jnp.float32))
    ptab = ptab.at[1, :N].set(dcos_t.astype(jnp.float32))
    mtab = jnp.zeros((2, Mpad), jnp.float32)
    mtab = mtab.at[0, :M].set(exp_t.astype(jnp.float32))
    mtab = mtab.at[1, :M].set(dexp_t.astype(jnp.float32))

    # Tile the element axis.  Guarantee >= 2 grid steps when possible so
    # dimension_semantics=("parallel",) can use both TensorCores on v7x.
    Lc = _round_up(L, _CHUNK)
    n_tiles = max(1, pl.cdiv(Lc, _MAX_TILE))
    if Lc >= 2 * _CHUNK:
        n_tiles = max(n_tiles, 2)
    TL = _round_up(pl.cdiv(Lc, n_tiles), _CHUNK)
    Lp = n_tiles * TL

    # Index 0 is a valid pad value; padded results are sliced off below.
    idx4p = jnp.zeros((4, Lp), jnp.int32).at[:, :L].set(idx4.astype(jnp.int32))

    kernel = functools.partial(phase_cell_kernel, N=N, M=M, chunk=_CHUNK)
    out = pl.pallas_call(
        kernel,
        out_shape=jax.ShapeDtypeStruct((8, Lp), jnp.float32),
        grid=(n_tiles,),
        in_specs=[pl.BlockSpec((4, TL), lambda i: (0, i)),       # packed indices
                  pl.BlockSpec((2, Npad), lambda i: (0, 0)),     # phase tables
                  pl.BlockSpec((2, Mpad), lambda i: (0, 0))],    # mag tables
        out_specs=pl.BlockSpec((8, TL), lambda i: (0, i)),       # packed outputs
        compiler_params=pltpu.CompilerParams(
            dimension_semantics=("parallel",)),
    )(idx4p, ptab, mtab)

    phase_out = jax.lax.bitcast_convert_type(out[0, :L], jnp.int32)
    mag_out = jax.lax.bitcast_convert_type(out[1, :L], jnp.int32)
    signal = out[2, :L]
    grad_phase = out[3, :L]
    grad_mag = out[4, :L]
    return phase_out, mag_out, signal, grad_phase, grad_mag


def phase_cell_forward(ctx_phase_idx, ctx_mag_idx, self_phase_idx, self_mag_idx,
                       cos_table, dcos_table, exp_table, dexp_table,
                       use_pallas=None):
    """Module-faithful single-cell forward. Index inputs: shape [D]."""
    idx4 = jnp.stack([ctx_phase_idx, ctx_mag_idx,
                      self_phase_idx, self_mag_idx]).astype(jnp.int32)  # (4, D)
    phase_out, mag_out, signal, grad_phase, grad_mag = _phase_cell_core(
        idx4, cos_table, dcos_table, exp_table, dexp_table, use_pallas)
    strength = jnp.sum(signal)           # scalar reduce fused by XLA
    return phase_out, mag_out, signal, strength, grad_phase, grad_mag


def phase_cell_forward_batched(ctx_phase_idx, ctx_mag_idx,
                               self_phase_idx, self_mag_idx,
                               cos_table, dcos_table, exp_table, dexp_table,
                               use_pallas=None):
    """B independent PhaseCells in ONE pallas_call. Index inputs: shape [B, D]."""
    B, D = ctx_phase_idx.shape
    idx4 = jnp.stack([ctx_phase_idx, ctx_mag_idx,
                      self_phase_idx, self_mag_idx]).reshape(4, B * D)
    phase_out, mag_out, signal, grad_phase, grad_mag = _phase_cell_core(
        idx4.astype(jnp.int32), cos_table, dcos_table, exp_table, dexp_table,
        use_pallas)
    phase_out = phase_out.reshape(B, D)
    mag_out = mag_out.reshape(B, D)
    signal = signal.reshape(B, D)
    grad_phase = grad_phase.reshape(B, D)
    grad_mag = grad_mag.reshape(B, D)
    strength = jnp.sum(signal, axis=1)                            # (B,)
    return phase_out, mag_out, signal, strength, grad_phase, grad_mag


def _reference(ctx_p, ctx_m, self_p, self_m, cos_t, dcos_t, exp_t, dexp_t, N, M):
    phase_out = (ctx_p + self_p) % N
    mag_out = (ctx_m + self_m) % M
    cos_vals = jnp.take(cos_t, phase_out)
    exp_vals = jnp.take(exp_t, mag_out)
    dcos_vals = jnp.take(dcos_t, phase_out)
    dexp_vals = jnp.take(dexp_t, mag_out)
    signal = cos_vals * exp_vals
    return (phase_out, mag_out, signal, dcos_vals * exp_vals, cos_vals * dexp_vals)


if __name__ == "__main__":
    D, N, M = 8, 64, 32   # vector_dim, phase table size, magnitude table size

    # Deterministic synthetic "lookup_module" parameters.
    angles = 2.0 * jnp.pi * jnp.arange(N, dtype=jnp.float32) / N
    cos_table = jnp.cos(angles)
    dcos_table = -jnp.sin(angles)                 # lookup_phase_grad
    mag_vals = jnp.linspace(-1.0, 1.0, M, dtype=jnp.float32)
    exp_table = jnp.exp(mag_vals)
    dexp_table = jnp.exp(mag_vals)                # lookup_magnitude_grad

    key = jax.random.PRNGKey(0)
    k = jax.random.split(key, 8)

    # --- single-cell (module-faithful), forced through the Pallas kernel ----
    ctx_phase_idx = jax.random.randint(k[0], (D,), 0, N, dtype=jnp.int32)
    ctx_mag_idx = jax.random.randint(k[1], (D,), 0, M, dtype=jnp.int32)
    self_phase_idx = jax.random.randint(k[2], (D,), 0, N, dtype=jnp.int32)
    self_mag_idx = jax.random.randint(k[3], (D,), 0, M, dtype=jnp.int32)

    outs = phase_cell_forward(ctx_phase_idx, ctx_mag_idx,
                              self_phase_idx, self_mag_idx,
                              cos_table, dcos_table, exp_table, dexp_table,
                              use_pallas=True)
    outs = jax.block_until_ready(outs)

    r_phase, r_mag, r_sig, r_gp, r_gm = _reference(
        ctx_phase_idx, ctx_mag_idx, self_phase_idx, self_mag_idx,
        cos_table, dcos_table, exp_table, dexp_table, N, M)

    np.testing.assert_array_equal(np.asarray(outs[0]), np.asarray(r_phase))
    np.testing.assert_array_equal(np.asarray(outs[1]), np.asarray(r_mag))
    np.testing.assert_allclose(np.asarray(outs[2]), np.asarray(r_sig), rtol=1e-5, atol=1e-5)
    np.testing.assert_allclose(np.asarray(outs[3]), np.asarray(jnp.sum(r_sig)),
                               rtol=1e-5, atol=1e-5)
    np.testing.assert_allclose(np.asarray(outs[4]), np.asarray(r_gp), rtol=1e-5, atol=1e-5)
    np.testing.assert_allclose(np.asarray(outs[5]), np.asarray(r_gm), rtol=1e-5, atol=1e-5)

    # --- auto dispatch (small L -> pure-JAX fallback) must agree ------------
    outs_auto = phase_cell_forward(ctx_phase_idx, ctx_mag_idx,
                                   self_phase_idx, self_mag_idx,
                                   cos_table, dcos_table, exp_table, dexp_table)
    outs_auto = jax.block_until_ready(outs_auto)
    for a, b in zip(outs, outs_auto):
        np.testing.assert_allclose(np.asarray(a), np.asarray(b), rtol=1e-5, atol=1e-5)

    # --- batched (B cells fused into one pallas_call; multi-tile grid) ------
    B, Db = 8, 128     # L = 1024 -> 2 grid tiles x 2 inner chunks
    bctx_p = jax.random.randint(k[4], (B, Db), 0, N, dtype=jnp.int32)
    bctx_m = jax.random.randint(k[5], (B, Db), 0, M, dtype=jnp.int32)
    bself_p = jax.random.randint(k[6], (B, Db), 0, N, dtype=jnp.int32)
    bself_m = jax.random.randint(k[7], (B, Db), 0, M, dtype=jnp.int32)

    bouts = phase_cell_forward_batched(bctx_p, bctx_m, bself_p, bself_m,
                                       cos_table, dcos_table, exp_table, dexp_table,
                                       use_pallas=True)
    bouts = jax.block_until_ready(bouts)

    b_phase, b_mag, b_sig, b_gp, b_gm = _reference(
        bctx_p, bctx_m, bself_p, bself_m,
        cos_table, dcos_table, exp_table, dexp_table, N, M)

    np.testing.assert_array_equal(np.asarray(bouts[0]), np.asarray(b_phase))
    np.testing.assert_array_equal(np.asarray(bouts[1]), np.asarray(b_mag))
    np.testing.assert_allclose(np.asarray(bouts[2]), np.asarray(b_sig), rtol=1e-5, atol=1e-5)
    np.testing.assert_allclose(np.asarray(bouts[3]), np.asarray(jnp.sum(b_sig, axis=1)),
                               rtol=1e-5, atol=1e-5)
    np.testing.assert_allclose(np.asarray(bouts[4]), np.asarray(b_gp), rtol=1e-5, atol=1e-5)
    np.testing.assert_allclose(np.asarray(bouts[5]), np.asarray(b_gm), rtol=1e-5, atol=1e-5)

    print("KERNEL_OK")
</pallas_src>

<mosaic_0001>
module attributes {stable_mosaic.version = 11 : i64} {
  func.func @phase_cell_kernel(%arg0: i32, %arg1: memref<4x256xi32, #tpu.memory_space<vmem>>, %arg2: memref<2x64xf32, #tpu.memory_space<vmem>>, %arg3: memref<2x32xf32, #tpu.memory_space<vmem>>, %arg4: memref<8x256xf32, #tpu.memory_space<vmem>>) attributes {dimension_semantics = [#tpu.dimension_semantics<parallel>], iteration_bounds = array<i64: 1>, scalar_prefetch = 0 : i64, scratch_operands = 0 : i64, tpu.core_type = #tpu.core_type<tc>, window_params = [{transform_indices = @transform_0, window_bounds = array<i64: 4, 256>}, {pipeline_mode = #tpu.pipeline_mode<synchronous>, transform_indices = @transform_1, window_bounds = array<i64: 2, 64>}, {pipeline_mode = #tpu.pipeline_mode<synchronous>, transform_indices = @transform_2, window_bounds = array<i64: 2, 32>}, {transform_indices = @transform_3, window_bounds = array<i64: 8, 256>}]} {
    %c0 = arith.constant 0 : index
    %c0_0 = arith.constant 0 : index
    %0 = vector.load %arg2[%c0, %c0_0] : memref<2x64xf32, #tpu.memory_space<vmem>>, vector<2x64xf32>
    %c0_1 = arith.constant 0 : index
    %c0_2 = arith.constant 0 : index
    %1 = vector.load %arg3[%c0_1, %c0_2] : memref<2x32xf32, #tpu.memory_space<vmem>>, vector<2x32xf32>
    %2 = tpu.iota {dimensions = array<i32: 0>} : vector<64x1xi32>
    %3 = tpu.iota {dimensions = array<i32: 0>} : vector<32x1xi32>
    %cst = arith.constant 0.000000e+00 : f32
    %4 = vector.broadcast %cst : f32 to vector<3x256xf32>
    %c0_3 = arith.constant 0 : index
    %c0_4 = arith.constant 0 : index
    %5 = vector.load %arg1[%c0_3, %c0_4] : memref<4x256xi32, #tpu.memory_space<vmem>>, vector<1x256xi32>
    %c1 = arith.constant 1 : index
    %c0_5 = arith.constant 0 : index
    %6 = vector.load %arg1[%c1, %c0_5] : memref<4x256xi32, #tpu.memory_space<vmem>>, vector<1x256xi32>
    %c2 = arith.constant 2 : index
    %c0_6 = arith.constant 0 : index
    %7 = vector.load %arg1[%c2, %c0_6] : memref<4x256xi32, #tpu.memory_space<vmem>>, vector<1x256xi32>
    %c3 = arith.constant 3 : index
    %c0_7 = arith.constant 0 : index
    %8 = vector.load %arg1[%c3, %c0_7] : memref<4x256xi32, #tpu.memory_space<vmem>>, vector<1x256xi32>
    %9 = arith.addi %5, %7 : vector<1x256xi32>
    %c64_i32 = arith.constant 64 : i32
    %10 = vector.broadcast %c64_i32 : i32 to vector<1x256xi32>
    %11 = arith.cmpi sge, %9, %10 : vector<1x256xi32>
    %c64_i32_8 = arith.constant 64 : i32
    %12 = vector.broadcast %c64_i32_8 : i32 to vector<1x256xi32>
    %13 = arith.subi %9, %12 : vector<1x256xi32>
    %14 = arith.select %11, %13, %9 : vector<1x256xi1>, vector<1x256xi32>
    %15 = arith.addi %6, %8 : vector<1x256xi32>
    %c32_i32 = arith.constant 32 : i32
    %16 = vector.broadcast %c32_i32 : i32 to vector<1x256xi32>
    %17 = arith.cmpi sge, %15, %16 : vector<1x256xi32>
    %c32_i32_9 = arith.constant 32 : i32
    %18 = vector.broadcast %c32_i32_9 : i32 to vector<1x256xi32>
    %19 = arith.subi %15, %18 : vector<1x256xi32>
    %20 = arith.select %17, %19, %15 : vector<1x256xi1>, vector<1x256xi32>
    %21 = vector.broadcast %2 : vector<64x1xi32> to vector<64x256xi32>
    %22 = vector.broadcast %14 : vector<1x256xi32> to vector<64x256xi32>
    %23 = arith.cmpi eq, %21, %22 : vector<64x256xi32>
    %24 = arith.extui %23 : vector<64x256xi1> to vector<64x256xi32>
    %25 = arith.sitofp %24 : vector<64x256xi32> to vector<64x256xf32>
    %26 = vector.broadcast %3 : vector<32x1xi32> to vector<32x256xi32>
    %27 = vector.broadcast %20 : vector<1x256xi32> to vector<32x256xi32>
    %28 = arith.cmpi eq, %26, %27 : vector<32x256xi32>
    %29 = arith.extui %28 : vector<32x256xi1> to vector<32x256xi32>
    %30 = arith.sitofp %29 : vector<32x256xi32> to vector<32x256xf32>
    %cst_10 = arith.constant dense<0.000000e+00> : vector<2x256xf32>
    %31 = tpu.matmul %0, %25, %cst_10 {dimension_numbers = #tpu.dot_dimension_numbers<[1], [0], [0], [1], [0, 0, 1, 1], [], []>} : vector<2x64xf32>, vector<64x256xf32>, vector<2x256xf32> -> vector<2x256xf32>
    %cst_11 = arith.constant dense<0.000000e+00> : vector<2x256xf32>
    %32 = tpu.matmul %1, %30, %cst_11 {dimension_numbers = #tpu.dot_dimension_numbers<[1], [0], [0], [1], [0, 0, 1, 1], [], []>} : vector<2x32xf32>, vector<32x256xf32>, vector<2x256xf32> -> vector<2x256xf32>
    %33 = vector.extract_strided_slice %31 {offsets = [0, 0], sizes = [1, 256], strides = [1, 1]} : vector<2x256xf32> to vector<1x256xf32>
    %34 = vector.extract_strided_slice %31 {offsets = [1, 0], sizes = [1, 256], strides = [1, 1]} : vector<2x256xf32> to vector<1x256xf32>
    %35 = vector.extract_strided_slice %32 {offsets = [0, 0], sizes = [1, 256], strides = [1, 1]} : vector<2x256xf32> to vector<1x256xf32>
    %36 = vector.extract_strided_slice %32 {offsets = [1, 0], sizes = [1, 256], strides = [1, 1]} : vector<2x256xf32> to vector<1x256xf32>
    %37 = tpu.bitcast %14 : vector<1x256xi32> -> vector<1x256xf32>
    %38 = tpu.bitcast %20 : vector<1x256xi32> -> vector<1x256xf32>
    %39 = arith.mulf %33, %35 : vector<1x256xf32>
    %40 = arith.mulf %34, %35 : vector<1x256xf32>
    %41 = arith.mulf %33, %36 : vector<1x256xf32>
    %42 = tpu.concatenate %37, %38, %39, %40, %41, %4 in 0 : vector<1x256xf32>, vector<1x256xf32>, vector<1x256xf32>, vector<1x256xf32>, vector<1x256xf32>, vector<3x256xf32> -> vector<8x256xf32>
    %c0_12 = arith.constant 0 : index
    %c0_13 = arith.constant 0 : index
    %43 = vector.load %arg4[%c0_12, %c0_13] : memref<8x256xf32, #tpu.memory_space<vmem>>, vector<8x256xf32>
    tpu.vector_store %arg4[%c0_12, %c0_13], %42 {strides = array<i32>} : memref<8x256xf32, #tpu.memory_space<vmem>>, vector<8x256xf32>,
    return
  }
  func.func @transform_0(%arg0: i32) -> (i32, i32) {
    %c0_i32 = arith.constant 0 : i32
    %c0_i32_0 = arith.constant 0 : i32
    return %c0_i32, %arg0 : i32, i32
  }
  func.func @transform_1(%arg0: i32) -> (i32, i32) {
    %c0_i32 = arith.constant 0 : i32
    %c0_i32_0 = arith.constant 0 : i32
    %c0_i32_1 = arith.constant 0 : i32
    return %c0_i32, %c0_i32_0 : i32, i32
  }
  func.func @transform_2(%arg0: i32) -> (i32, i32) {
    %c0_i32 = arith.constant 0 : i32
    %c0_i32_0 = arith.constant 0 : i32
    %c0_i32_1 = arith.constant 0 : i32
    return %c0_i32, %c0_i32_0 : i32, i32
  }
  func.func @transform_3(%arg0: i32) -> (i32, i32) {
    %c0_i32 = arith.constant 0 : i32
    %c0_i32_0 = arith.constant 0 : i32
    return %c0_i32, %arg0 : i32, i32
  }
}

</mosaic_0001>

<llo_original>
// kernel: tpu_custom_call.1
$region0: #{tpu_custom_call.1}
  #allocation0 [shape = 'u32[]', space=smem, size = 0x4, offset = 0x4, fixed_abs, tag = 'smem constant byte address 0x4 - core index']
  #allocation1 [shape = 'u32[144,128]{1,0:T(1,128)}', space=vmem, size = 0x12000, scoped, tag = 'internal scratch']
  %s0 = inlined_call_operand.hbm [shape: s32[4,256], index: 0, kind: input, shape index: {}]
  %s1 = inlined_call_operand.vmem [shape: f32[2,64], index: 1, kind: input, shape index: {}]
  %s2 = inlined_call_operand.vmem [shape: f32[2,32], index: 2, kind: input, shape index: {}]
  %s3 = inlined_call_operand.hbm [shape: f32[8,256], index: 3, kind: output, shape index: {}]
  %s4 = sld [smem:[#allocation0]]
  $region26: #{tpu_custom_call.1} parent=0
    _
  %s6 = ssub.s32 1, %s4
  %s7 = scalar_select 0, %s6, %s4
  $region1: #{tpu_custom_call.1} parent=0
    #allocation2 [shape = 'u8[4096]{0}', space=vmem, size = 0x1000, scoped, tag = 'input window, operand 0, single buffered']
    #allocation3 [shape = 's32[1]{0}', space=sflag, size = 0x4, scoped, tag = 'scoped memory for tpu_custom_call.1']
    #allocation4 [shape = 's32[1]{0}', space=sflag, size = 0x4, scoped, tag = 'scoped memory for tpu_custom_call.1']
    #allocation5 [shape = 'u8[8192]{0}', space=vmem, size = 0x2000, scoped, tag = 'output window, operand 0, single buffered']
    %8 = vsyncpa [#allocation3], 0
    %9 = vsyncpa [#allocation4], 0
    // Predicated region
    $region2: #{tpu_custom_call.1} parent=1 // pred_check
      _
    $region3: #{tpu_custom_call.1} parent=1 // pred_check_branch
      %11 = sbr.rel (0) target = $region5
    $region4: #{tpu_custom_call.1} parent=1 // pred_region
      %s13 = ssub.s32 128, 128
      %14 = vsyncadd [#allocation3], %s13
      %s16 = sshll.u32 [#allocation2], 4
      %s17 = int_to_ptr.vmem [resolvable:$true] %s16
      %19 = dma.hbm_to_vmem [thread:$0]  %s0, 128, %s17, [#allocation3]
    $region5: #{tpu_custom_call.1} parent=1 // pred_fallthru
      _
    // Predicated region
    $region6: #{tpu_custom_call.1} parent=1 // pred_check
      _
    $region7: #{tpu_custom_call.1} parent=1 // pred_check_branch
      %21 = sbr.rel (0) target = $region9
    $region8: #{tpu_custom_call.1} parent=1 // pred_region
      _
    $region9: #{tpu_custom_call.1} parent=1 // pred_fallthru
      _
    // Predicated region
    $region10: #{tpu_custom_call.1} parent=1 // pred_check
      _
    $region11: #{tpu_custom_call.1} parent=1 // pred_check_branch
      %23 = sbr.rel (0) target = $region13
    $region12: #{tpu_custom_call.1} parent=1 // pred_region
      _
    $region13: #{tpu_custom_call.1} parent=1 // pred_fallthru
      _
    // Predicated region
    $region14: #{tpu_custom_call.1} parent=1 // pred_check
      _
    $region15: #{tpu_custom_call.1} parent=1 // pred_check_branch
      %25 = sbr.rel (0) target = $region17
    $region16: #{tpu_custom_call.1} parent=1 // pred_region
      %26 = dma.done [#allocation3], 128
    $region17: #{tpu_custom_call.1} parent=1 // pred_fallthru
      _
    %v27 = vld [vmem:[%s1] sm:$0x3]
    %v28 = vld [vmem:[%s2] sm:$0x3]
    %v29 = vlaneseq
    %v30 = vshrl.u32 %v29, 7
    %v31 = vadd.s32 %v30, 8
    %v32 = vadd.s32 %v30, 16
    %v33 = vadd.s32 %v30, 24
    %v34 = vadd.s32 %v30, 32
    %v35 = vadd.s32 %v30, 40
    %v36 = vadd.s32 %v30, 48
    %v37 = vadd.s32 %v30, 56
    %v38 = vld [vmem:[#allocation2] ss:$4 sm:$0x3]
    %s39 = scalar_lea.vmem [#allocation2], 1
    %v40 = vld [vmem:[%s39] ss:$4 sm:$0x3]
    %s41 = scalar_lea.vmem [#allocation2], 2
    %v42 = vld [vmem:[%s41] ss:$4 sm:$0x3]
    %s43 = scalar_lea.vmem [#allocation2], 3
    %v44 = vld [vmem:[%s43] ss:$4 sm:$0x3]
    %v45 = vadd.s32 %v38, %v42
    %vm46 = vcmp.ge.s32.totalorder %v45, 64
    %v47 = vsub.s32 %v45, 64
    %v48 = vsel %vm46, %v47, %v45
    %v49 = vadd.s32 %v40, %v44
    %vm50 = vcmp.ge.s32.totalorder %v49, 32
    %v51 = vsub.s32 %v49, 32
    %v52 = vsel %vm50, %v51, %v49
    %v53 = vlaneseq
    %v54 = vshrl.u32 %v53, 7
    %v55 = vsub.s32 0, %v54
    %v56 = vrot.slane %v48, %v55
    %v57 = vlaneseq
    %v58 = vshrl.u32 %v57, 7
    %v59 = vsub.s32 1, %v58
    %v60 = vrot.slane %v48, %v59
    %vm61 = vcmp.eq.s32.totalorder %v30, %v56
    %vm62 = vcmp.eq.s32.totalorder %v30, %v60
    %vm63 = vcmp.eq.s32.totalorder %v31, %v56
    %vm64 = vcmp.eq.s32.totalorder %v31, %v60
    %vm65 = vcmp.eq.s32.totalorder %v32, %v56
    %vm66 = vcmp.eq.s32.totalorder %v32, %v60
    %vm67 = vcmp.eq.s32.totalorder %v33, %v56
    %vm68 = vcmp.eq.s32.totalorder %v33, %v60
    %vm69 = vcmp.eq.s32.totalorder %v34, %v56
    %vm70 = vcmp.eq.s32.totalorder %v34, %v60
    %vm71 = vcmp.eq.s32.totalorder %v35, %v56
    %vm72 = vcmp.eq.s32.totalorder %v35, %v60
    %vm73 = vcmp.eq.s32.totalorder %v36, %v56
    %vm74 = vcmp.eq.s32.totalorder %v36, %v60
    %vm75 = vcmp.eq.s32.totalorder %v37, %v56
    %vm76 = vcmp.eq.s32.totalorder %v37, %v60
    %v77 = vsel %vm61, 1, 0
    %v78 = vsel %vm62, 1, 0
    %v79 = vsel %vm63, 1, 0
    %v80 = vsel %vm64, 1, 0
    %v81 = vsel %vm65, 1, 0
    %v82 = vsel %vm66, 1, 0
    %v83 = vsel %vm67, 1, 0
    %v84 = vsel %vm68, 1, 0
    %v85 = vsel %vm69, 1, 0
    %v86 = vsel %vm70, 1, 0
    %v87 = vsel %vm71, 1, 0
    %v88 = vsel %vm72, 1, 0
    %v89 = vsel %vm73, 1, 0
    %v90 = vsel %vm74, 1, 0
    %v91 = vsel %vm75, 1, 0
    %v92 = vsel %vm76, 1, 0
    %v93 = vcvt.s32.f32 %v77
    %v94 = vcvt.s32.f32 %v78
    %v95 = vcvt.s32.f32 %v79
    %v96 = vcvt.s32.f32 %v80
    %v97 = vcvt.s32.f32 %v81
    %v98 = vcvt.s32.f32 %v82
    %v99 = vcvt.s32.f32 %v83
    %v100 = vcvt.s32.f32 %v84
    %v101 = vcvt.s32.f32 %v85
    %v102 = vcvt.s32.f32 %v86
    %v103 = vcvt.s32.f32 %v87
    %v104 = vcvt.s32.f32 %v88
    %v105 = vcvt.s32.f32 %v89
    %v106 = vcvt.s32.f32 %v90
    %v107 = vcvt.s32.f32 %v91
    %v108 = vcvt.s32.f32 %v92
    %v109 = vlaneseq
    %v110 = vshrl.u32 %v109, 7
    %v111 = vsub.s32 0, %v110
    %v112 = vrot.slane %v52, %v111
    %v113 = vlaneseq
    %v114 = vshrl.u32 %v113, 7
    %v115 = vsub.s32 1, %v114
    %v116 = vrot.slane %v52, %v115
    %vm117 = vcmp.eq.s32.totalorder %v30, %v112
    %vm118 = vcmp.eq.s32.totalorder %v30, %v116
    %vm119 = vcmp.eq.s32.totalorder %v31, %v112
    %vm120 = vcmp.eq.s32.totalorder %v31, %v116
    %vm121 = vcmp.eq.s32.totalorder %v32, %v112
    %vm122 = vcmp.eq.s32.totalorder %v32, %v116
    %vm123 = vcmp.eq.s32.totalorder %v33, %v112
    %vm124 = vcmp.eq.s32.totalorder %v33, %v116
    %v125 = vsel %vm117, 1, 0
    %v126 = vsel %vm118, 1, 0
    %v127 = vsel %vm119, 1, 0
    %v128 = vsel %vm120, 1, 0
    %v129 = vsel %vm121, 1, 0
    %v130 = vsel %vm122, 1, 0
    %v131 = vsel %vm123, 1, 0
    %v132 = vsel %vm124, 1, 0
    %v133 = vcvt.s32.f32 %v125
    %v134 = vcvt.s32.f32 %v126
    %v135 = vcvt.s32.f32 %v127
    %v136 = vcvt.s32.f32 %v128
    %v137 = vcvt.s32.f32 %v129
    %v138 = vcvt.s32.f32 %v130
    %v139 = vcvt.s32.f32 %v131
    %v140 = vcvt.s32.f32 %v132
    %vm141 = vcmask 523264
    %v143 = vsel %vm141, %v27, 0
    %145 = vmatprep.subr.mxu0 %v94
    %146 = vmatpush1.msra.mxu0 %v93
    %147 = vmatprep.subr.mxu0 %v96
    %148 = vmatpush1.msra.mxu0 %v95
    %149 = vmatprep.subr.mxu0 %v98
    %150 = vmatpush1.msra.mxu0 %v97
    %151 = vmatprep.subr.mxu0 %v100
    %152 = vmatpush1.msra.mxu0 %v99
    %153 = vmatprep.subr.mxu0 %v102
    %154 = vmatpush1.msra.mxu0 %v101
    %155 = vmatprep.subr.mxu0 %v104
    %156 = vmatpush1.msra.mxu0 %v103
    %157 = vmatprep.subr.mxu0 %v106
    %158 = vmatpush1.msra.mxu0 %v105
    %159 = vmatprep.subr.mxu0 %v108
    %160 = vmatpush1.msra.mxu0 %v107
    %161 = vmatprep.subr.mxu0 0.0
    %162 = vmatpush1.msra.mxu0 0.0
    %163 = vmatprep.subr.mxu0 0.0
    %164 = vmatpush1.msra.mxu0 0.0
    %165 = vmatprep.subr.mxu0 0.0
    %166 = vmatpush1.msra.mxu0 0.0
    %167 = vmatprep.subr.mxu0 0.0
    %168 = vmatpush1.msra.mxu0 0.0
    %169 = vmatprep.subr.mxu0 0.0
    %170 = vmatpush1.msra.mxu0 0.0
    %171 = vmatprep.subr.mxu0 0.0
    %172 = vmatpush1.msra.mxu0 0.0
    %173 = vmatprep.subr.mxu0 0.0
    %174 = vmatpush1.msra.mxu0 0.0
    %175 = vmatprep.subr.mxu0 0.0
    %176 = vmatpush1.msra.mxu0 0.0
    %177 = vmatprep.subr.mxu0 0.0
    %178 = vmatpush1.msra.mxu0 0.0
    %179 = vmatprep.subr.mxu0 0.0
    %180 = vmatpush1.msra.mxu0 0.0
    %181 = vmatprep.subr.mxu0 0.0
    %182 = vmatpush1.msra.mxu0 0.0
    %183 = vmatprep.subr.mxu0 0.0
    %184 = vmatpush1.msra.mxu0 0.0
    %185 = vmatprep.subr.mxu0 0.0
    %186 = vmatpush1.msra.mxu0 0.0
    %187 = vmatprep.subr.mxu0 0.0
    %188 = vmatpush1.msra.mxu0 0.0
    %189 = vmatprep.subr.mxu0 0.0
    %190 = vmatpush1.msra.mxu0 0.0
    %191 = vmatprep.subr.mxu0 0.0
    %192 = vmatpush1.msra.mxu0 0.0
    %193 = vmatprep.subr.mxu0 0.0
    %194 = vmatpush1.msra.mxu0 0.0
    %195 = vmatprep.subr.mxu0 0.0
    %196 = vmatpush1.msra.mxu0 0.0
    %197 = vmatprep.subr.mxu0 0.0
    %198 = vmatpush1.msra.mxu0 0.0
    %199 = vmatprep.subr.mxu0 0.0
    %200 = vmatpush1.msra.mxu0 0.0
    %201 = vmatprep.subr.mxu0 0.0
    %202 = vmatpush1.msra.mxu0 0.0
    %203 = vmatprep.subr.mxu0 0.0
    %204 = vmatpush1.msra.mxu0 0.0
    %205 = vmatprep.subr.mxu0 0.0
    %206 = vmatpush1.msra.mxu0 0.0
    %207 = vmatprep.subr.mxu0 0.0
    %208 = vmatpush1.msra.mxu0 0.0
    %209 = vmatprep.mubr.f32.mxu0 0.0
    %210 = vmatmul.mubr.f32.gmra.mrb[0].mxu0 %v143
    %v211 = vpop.f32.mrb[0].mxu0
    %v212 = vadd.f32 0.0, %v211
    %v213 = vpop.f32.mrb[0].mxu0
    %v214 = vadd.f32 0.0, %v213
    %215 = vdwg.mxu0
    %vm216 = vcmask 261120
    %v218 = vsel %vm216, %v28, 0
    %220 = vmatprep.subr.mxu0 %v134
    %221 = vmatpush1.msra.mxu0 %v133
    %222 = vmatprep.subr.mxu0 %v136
    %223 = vmatpush1.msra.mxu0 %v135
    %224 = vmatprep.subr.mxu0 %v138
    %225 = vmatpush1.msra.mxu0 %v137
    %226 = vmatprep.subr.mxu0 %v140
    %227 = vmatpush1.msra.mxu0 %v139
    %228 = vmatprep.subr.mxu0 0.0
    %229 = vmatpush1.msra.mxu0 0.0
    %230 = vmatprep.subr.mxu0 0.0
    %231 = vmatpush1.msra.mxu0 0.0
    %232 = vmatprep.subr.mxu0 0.0
    %233 = vmatpush1.msra.mxu0 0.0
    %234 = vmatprep.subr.mxu0 0.0
    %235 = vmatpush1.msra.mxu0 0.0
    %236 = vmatprep.subr.mxu0 0.0
    %237 = vmatpush1.msra.mxu0 0.0
    %238 = vmatprep.subr.mxu0 0.0
    %239 = vmatpush1.msra.mxu0 0.0
    %240 = vmatprep.subr.mxu0 0.0
    %241 = vmatpush1.msra.mxu0 0.0
    %242 = vmatprep.subr.mxu0 0.0
    %243 = vmatpush1.msra.mxu0 0.0
    %244 = vmatprep.subr.mxu0 0.0
    %245 = vmatpush1.msra.mxu0 0.0
    %246 = vmatprep.subr.mxu0 0.0
    %247 = vmatpush1.msra.mxu0 0.0
    %248 = vmatprep.subr.mxu0 0.0
    %249 = vmatpush1.msra.mxu0 0.0
    %250 = vmatprep.subr.mxu0 0.0
    %251 = vmatpush1.msra.mxu0 0.0
    %252 = vmatprep.subr.mxu0 0.0
    %253 = vmatpush1.msra.mxu0 0.0
    %254 = vmatprep.subr.mxu0 0.0
    %255 = vmatpush1.msra.mxu0 0.0
    %256 = vmatprep.subr.mxu0 0.0
    %257 = vmatpush1.msra.mxu0 0.0
    %258 = vmatprep.subr.mxu0 0.0
    %259 = vmatpush1.msra.mxu0 0.0
    %260 = vmatprep.subr.mxu0 0.0
    %261 = vmatpush1.msra.mxu0 0.0
    %262 = vmatprep.subr.mxu0 0.0
    %263 = vmatpush1.msra.mxu0 0.0
    %264 = vmatprep.subr.mxu0 0.0
    %265 = vmatpush1.msra.mxu0 0.0
    %266 = vmatprep.subr.mxu0 0.0
    %267 = vmatpush1.msra.mxu0 0.0
    %268 = vmatprep.subr.mxu0 0.0
    %269 = vmatpush1.msra.mxu0 0.0
    %270 = vmatprep.subr.mxu0 0.0
    %271 = vmatpush1.msra.mxu0 0.0
    %272 = vmatprep.subr.mxu0 0.0
    %273 = vmatpush1.msra.mxu0 0.0
    %274 = vmatprep.subr.mxu0 0.0
    %275 = vmatpush1.msra.mxu0 0.0
    %276 = vmatprep.subr.mxu0 0.0
    %277 = vmatpush1.msra.mxu0 0.0
    %278 = vmatprep.subr.mxu0 0.0
    %279 = vmatpush1.msra.mxu0 0.0
    %280 = vmatprep.subr.mxu0 0.0
    %281 = vmatpush1.msra.mxu0 0.0
    %282 = vmatprep.subr.mxu0 0.0
    %283 = vmatpush1.msra.mxu0 0.0
    %284 = vmatprep.mubr.f32.mxu0 0.0
    %285 = vmatmul.mubr.f32.gmra.mrb[0].mxu0 %v218
    %v286 = vpop.f32.mrb[0].mxu0
    %v287 = vadd.f32 0.0, %v286
    %v288 = vpop.f32.mrb[0].mxu0
    %v289 = vadd.f32 0.0, %v288
    %290 = vdwg.mxu0
    %v293 = vmul.f32 %v212, %v287
    %v294 = vmul.f32 %v214, %v289
    %v297 = vrot.slane %v287, 7
    %v298 = vrot.slane %v289, 7
    %v301 = vmul.f32 %v212, %v297
    %v302 = vmul.f32 %v214, %v298
    %v303 = vrot.slane %v287, 1
    %v304 = vrot.slane %v289, 1
    %v307 = vmul.f32 %v212, %v303
    %v308 = vmul.f32 %v214, %v304
    %v309 = vrot.slane %v112, 7
    %v310 = vrot.slane %v116, 7
    %v315 = vrot.slane %v293, 6
    %v316 = vrot.slane %v294, 6
    %v321 = vrot.slane %v301, 6
    %v322 = vrot.slane %v302, 6
    %v327 = vrot.slane %v307, 4
    %v328 = vrot.slane %v308, 4
    %vm331 = vcmask 1040384
    %v332 = vsel %vm331, %v56, %v309
    %v333 = vsel %vm331, %v60, %v310
    %vm334 = vcmask 1041408
    %v335 = vsel %vm334, %v332, %v315
    %v336 = vsel %vm334, %v333, %v316
    %vm337 = vcmask 1042432
    %v338 = vsel %vm337, %v335, %v321
    %v339 = vsel %vm337, %v336, %v322
    %vm340 = vcmask 1043456
    %v341 = vsel %vm340, %v338, %v327
    %v342 = vsel %vm340, %v339, %v328
    %vm343 = vcmask 1044480
    %v344 = vsel %vm343, %v341, 0.0
    %v345 = vsel %vm343, %v342, 0.0
    %346 = vst [vmem:[#allocation5] sm:$0xff] %v344
    %347 = vst [vmem:[#allocation5 + $0x8] sm:$0xff] %v345
    // Predicated region
    $region18: #{tpu_custom_call.1} parent=1 // pred_check
      _
    $region19: #{tpu_custom_call.1} parent=1 // pred_check_branch
      %349 = sbr.rel (0) target = $region21
    $region20: #{tpu_custom_call.1} parent=1 // pred_region
      %s351 = ssub.s32 256, 256
      %352 = vsyncadd [#allocation4], %s351
      %s354 = sshll.u32 [#allocation5], 4
      %s355 = int_to_ptr.vmem [resolvable:$true] %s354
      %357 = dma.vmem_to_hbm [thread:$0]  %s355, 256, %s3, [#allocation4]
    $region21: #{tpu_custom_call.1} parent=1 // pred_fallthru
      _
    // Predicated region
    $region22: #{tpu_custom_call.1} parent=1 // pred_check
      _
    $region23: #{tpu_custom_call.1} parent=1 // pred_check_branch
      %359 = sbr.rel (0) target = $region25
    $region24: #{tpu_custom_call.1} parent=1 // pred_region
      %360 = dma.done [#allocation4], 256
    $region25: #{tpu_custom_call.1} parent=1 // pred_fallthru
      _
    %361 = vsyncpa [#allocation3], 1
    %362 = vsyncpa [#allocation4], 1

</llo_original>
